<compile_context>
chip_gen: v7x
topology: tpu7x:2x2x1
jax: 0.10.0
libtpu: 0.0.40
codegen_flags: <defaults>
</compile_context>

<pallas_src>
import functools

import jax
import jax.numpy as jnp
from jax.experimental import pallas as pl
from jax.experimental.pallas import tpu as pltpu

D_IN = 120      # config.mlp1_output_size (input dim of f1)
HIDDEN = 80     # f1 output dim
D_OUT = 60      # config.mlp2_output_size (output dim of f2)
LANE = 128      # TPU lane width; hidden dim zero-padded up to this
TB_CAP = 4096   # batch-tile cap (VMEM-safe on v7x's 64 MiB/TC with bf16 or f32)


def _round_up(x, m):
    return ((x + m - 1) // m) * m


def _choose_tb(B):
    """Sublane-aligned batch tile: >=2 grid steps (v7x megacore) when B allows,
    capped so double-buffered blocks + f32 temporaries stay well under the
    32 MiB scoped-VMEM default on every generation."""
    if B <= 16:
        return _round_up(max(B, 8), 8)
    tb = _round_up(-(-B // 2), 8)          # ceil(B/2) rounded up to 8
    return min(tb, TB_CAP)


def mlp2_kernel(x_ref, w1_ref, b1_ref, w2_ref, b2_ref, o_ref):
    # h = relu(x @ W1 + b1)   -> [tb, 128]; padded hidden lanes stay exactly 0
    x = x_ref[...].astype(w1_ref.dtype)
    h = jnp.dot(x, w1_ref[...], preferred_element_type=jnp.float32)
    h = jnp.maximum(h + b1_ref[...], 0.0)            # bias/ReLU in f32 (v5e-safe)
    # y = h @ W2 + b2         -> [tb, 60]; written unpadded
    y = jnp.dot(h.astype(w2_ref.dtype), w2_ref[...],
                preferred_element_type=jnp.float32)
    o_ref[...] = (y + b2_ref[...]).astype(o_ref.dtype)


def prepare_mlp2_params(w1, b1, w2, b2, compute_dtype=jnp.bfloat16):
    """One-time prep (NOT per forward call): transpose PyTorch [out, in] weights
    to [in, out], zero-pad the HIDDEN dim to 128 lanes, cast weights to the
    compute dtype (default bf16).  Biases stay f32 (bias adds run in f32 in the
    kernel); padded b1/W2 entries are zero, so padded hidden lanes stay exactly
    0 through ReLU and contribute nothing to the second matmul."""
    h_pad = LANE - HIDDEN
    w1_t = jnp.pad(jnp.transpose(w1), ((0, 0), (0, h_pad)))   # [120, 128]
    b1_p = jnp.pad(b1, (0, h_pad)).reshape(1, LANE)           # [1, 128]
    w2_t = jnp.pad(jnp.transpose(w2), ((0, h_pad), (0, 0)))   # [128, 60]
    b2_p = b2.reshape(1, D_OUT)                               # [1, 60]
    return (w1_t.astype(compute_dtype), b1_p.astype(jnp.float32),
            w2_t.astype(compute_dtype), b2_p.astype(jnp.float32))


@functools.partial(jax.jit, static_argnames=("tb",))
def mlp2_forward(x, params, tb=None):
    """x: [B, 120] (ideally bf16 from the producer; f32 also accepted);
    params from prepare_mlp2_params()."""
    w1_t, b1_p, w2_t, b2_p = params
    B = x.shape[0]
    assert x.shape[1] == D_IN
    if tb is None:
        tb = _choose_tb(B)
    grid = (pl.cdiv(B, tb),)

    itemsize = jnp.dtype(x.dtype).itemsize
    w_bytes = (w1_t.size + w2_t.size) * jnp.dtype(w1_t.dtype).itemsize \
              + (b1_p.size + b2_p.size) * 4
    cost = pl.CostEstimate(
        flops=2 * B * (D_IN * LANE + LANE * D_OUT),
        transcendentals=0,
        bytes_accessed=B * D_IN * itemsize + B * D_OUT * itemsize + w_bytes,
    )

    return pl.pallas_call(
        mlp2_kernel,
        out_shape=jax.ShapeDtypeStruct((B, D_OUT), x.dtype),
        grid=grid,
        in_specs=[
            # x streams over the batch; last dim 120 == full array dim (allowed)
            pl.BlockSpec((tb, D_IN), lambda i: (i, 0)),
            # weights / biases resident across all grid steps
            pl.BlockSpec((D_IN, LANE), lambda i: (0, 0)),
            pl.BlockSpec((1, LANE), lambda i: (0, 0)),
            pl.BlockSpec((LANE, D_OUT), lambda i: (0, 0)),
            pl.BlockSpec((1, D_OUT), lambda i: (0, 0)),
        ],
        # Unpadded output: (tb, 60); 60 == full output dim, so allowed.
        out_specs=pl.BlockSpec((tb, D_OUT), lambda i: (i, 0)),
        compiler_params=pltpu.CompilerParams(
            dimension_semantics=("parallel",)),   # megacore sharding on v7x
        cost_estimate=cost,
    )(x, w1_t, b1_p, w2_t, b2_p)


def init_linear_params(key, out_features, in_features, dtype=jnp.float32):
    """Deterministic init mimicking PyTorch nn.Linear: U(-1/sqrt(in), 1/sqrt(in))."""
    k_w, k_b = jax.random.split(key)
    bound = 1.0 / (in_features ** 0.5)
    w = jax.random.uniform(k_w, (out_features, in_features), dtype,
                           minval=-bound, maxval=bound)
    b = jax.random.uniform(k_b, (out_features,), dtype,
                           minval=-bound, maxval=bound)
    return w, b


if __name__ == "__main__":
    key = jax.random.PRNGKey(0)
    k_x, k_f1, k_f2 = jax.random.split(key, 3)

    B = 256   # small demo batch; auto tb=128 -> 2-step parallel grid
    x = jax.random.normal(k_x, (B, D_IN), dtype=jnp.float32)
    w1, b1 = init_linear_params(k_f1, HIDDEN, D_IN)
    w2, b2 = init_linear_params(k_f2, D_OUT, HIDDEN)

    # Pure-JAX reference of the PyTorch forward.
    ref = jnp.maximum(x @ w1.T + b1, 0.0) @ w2.T + b2

    # --- default bf16 compute path (HBM-bound op: halves streamed bytes) ---
    params_bf16 = prepare_mlp2_params(w1, b1, w2, b2)      # bf16 default
    x_bf = x.astype(jnp.bfloat16)   # in real use the producer emits bf16
    out_bf = jax.block_until_ready(mlp2_forward(x_bf, params_bf16))
    assert out_bf.shape == (B, D_OUT)
    # bf16-aware reference (f32 accumulation, f32 bias adds) for a tight check.
    h_ref = jnp.maximum(
        jnp.dot(x_bf, w1.T.astype(jnp.bfloat16),
                preferred_element_type=jnp.float32) + b1, 0.0)
    ref_bf = jnp.dot(h_ref.astype(jnp.bfloat16), w2.T.astype(jnp.bfloat16),
                     preferred_element_type=jnp.float32) + b2
    assert jnp.allclose(out_bf.astype(jnp.float32), ref_bf, atol=2e-2, rtol=2e-2)
    # Loose check against the pure-f32 module reference as well.
    assert jnp.allclose(out_bf.astype(jnp.float32), ref, atol=5e-2, rtol=5e-2)

    # --- f32 compute path (tight numerical check of the kernel itself) ---
    params_f32 = prepare_mlp2_params(w1, b1, w2, b2, jnp.float32)
    out = jax.block_until_ready(mlp2_forward(x, params_f32))
    assert out.shape == (B, D_OUT)
    assert jnp.allclose(out, ref, atol=1e-4, rtol=1e-4)

    print("KERNEL_OK")
</pallas_src>

<mosaic_0001>
module attributes {stable_mosaic.version = 11 : i64} {
  func.func @mlp2_kernel(%arg0: i32, %arg1: memref<128x120xbf16, #tpu.memory_space<vmem>>, %arg2: memref<120x128xbf16, #tpu.memory_space<vmem>>, %arg3: memref<1x128xf32, #tpu.memory_space<vmem>>, %arg4: memref<128x60xbf16, #tpu.memory_space<vmem>>, %arg5: memref<1x60xf32, #tpu.memory_space<vmem>>, %arg6: memref<128x60xbf16, #tpu.memory_space<vmem>>) attributes {dimension_semantics = [#tpu.dimension_semantics<parallel>], iteration_bounds = array<i64: 2>, scalar_prefetch = 0 : i64, scratch_operands = 0 : i64, tpu.core_type = #tpu.core_type<tc>, window_params = [{transform_indices = @transform_0, window_bounds = array<i64: 128, 120>}, {pipeline_mode = #tpu.pipeline_mode<synchronous>, transform_indices = @transform_1, window_bounds = array<i64: 120, 128>}, {pipeline_mode = #tpu.pipeline_mode<synchronous>, transform_indices = @transform_2, window_bounds = array<i64: 1, 128>}, {pipeline_mode = #tpu.pipeline_mode<synchronous>, transform_indices = @transform_3, window_bounds = array<i64: 128, 60>}, {pipeline_mode = #tpu.pipeline_mode<synchronous>, transform_indices = @transform_4, window_bounds = array<i64: 1, 60>}, {transform_indices = @transform_5, window_bounds = array<i64: 128, 60>}]} {
    %c0 = arith.constant 0 : index
    %c0_0 = arith.constant 0 : index
    %0 = vector.load %arg1[%c0, %c0_0] : memref<128x120xbf16, #tpu.memory_space<vmem>>, vector<128x120xbf16>
    %c0_1 = arith.constant 0 : index
    %c0_2 = arith.constant 0 : index
    %1 = vector.load %arg2[%c0_1, %c0_2] : memref<120x128xbf16, #tpu.memory_space<vmem>>, vector<120x128xbf16>
    %cst = arith.constant dense<0.000000e+00> : vector<128x128xf32>
    %2 = tpu.matmul %0, %1, %cst {dimension_numbers = #tpu.dot_dimension_numbers<[1], [0], [0], [1], [0, 0, 1, 1], [], []>} : vector<128x120xbf16>, vector<120x128xbf16>, vector<128x128xf32> -> vector<128x128xf32>
    %c0_3 = arith.constant 0 : index
    %c0_4 = arith.constant 0 : index
    %3 = vector.load %arg3[%c0_3, %c0_4] : memref<1x128xf32, #tpu.memory_space<vmem>>, vector<1x128xf32>
    %4 = vector.broadcast %3 : vector<1x128xf32> to vector<128x128xf32>
    %5 = arith.addf %2, %4 : vector<128x128xf32>
    %cst_5 = arith.constant 0.000000e+00 : f32
    %6 = vector.broadcast %cst_5 : f32 to vector<128x128xf32>
    %7 = arith.maximumf %5, %6 : vector<128x128xf32>
    %8 = arith.truncf %7 : vector<128x128xf32> to vector<128x128xbf16>
    %c0_6 = arith.constant 0 : index
    %c0_7 = arith.constant 0 : index
    %9 = vector.load %arg4[%c0_6, %c0_7] : memref<128x60xbf16, #tpu.memory_space<vmem>>, vector<128x60xbf16>
    %cst_8 = arith.constant dense<0.000000e+00> : vector<128x60xf32>
    %10 = tpu.matmul %8, %9, %cst_8 {dimension_numbers = #tpu.dot_dimension_numbers<[1], [0], [0], [1], [0, 0, 1, 1], [], []>} : vector<128x128xbf16>, vector<128x60xbf16>, vector<128x60xf32> -> vector<128x60xf32>
    %c0_9 = arith.constant 0 : index
    %c0_10 = arith.constant 0 : index
    %11 = vector.load %arg5[%c0_9, %c0_10] : memref<1x60xf32, #tpu.memory_space<vmem>>, vector<1x60xf32>
    %12 = vector.broadcast %11 : vector<1x60xf32> to vector<128x60xf32>
    %13 = arith.addf %10, %12 : vector<128x60xf32>
    %14 = arith.truncf %13 : vector<128x60xf32> to vector<128x60xbf16>
    %c0_11 = arith.constant 0 : index
    %c0_12 = arith.constant 0 : index
    %15 = vector.load %arg6[%c0_11, %c0_12] : memref<128x60xbf16, #tpu.memory_space<vmem>>, vector<128x60xbf16>
    tpu.vector_store %arg6[%c0_11, %c0_12], %14 {strides = array<i32>} : memref<128x60xbf16, #tpu.memory_space<vmem>>, vector<128x60xbf16>,
    return
  }
  func.func @transform_0(%arg0: i32) -> (i32, i32) {
    %c0_i32 = arith.constant 0 : i32
    %c0_i32_0 = arith.constant 0 : i32
    return %arg0, %c0_i32 : i32, i32
  }
  func.func @transform_1(%arg0: i32) -> (i32, i32) {
    %c0_i32 = arith.constant 0 : i32
    %c0_i32_0 = arith.constant 0 : i32
    %c0_i32_1 = arith.constant 0 : i32
    return %c0_i32, %c0_i32_0 : i32, i32
  }
  func.func @transform_2(%arg0: i32) -> (i32, i32) {
    %c0_i32 = arith.constant 0 : i32
    %c0_i32_0 = arith.constant 0 : i32
    %c0_i32_1 = arith.constant 0 : i32
    return %c0_i32, %c0_i32_0 : i32, i32
  }
  func.func @transform_3(%arg0: i32) -> (i32, i32) {
    %c0_i32 = arith.constant 0 : i32
    %c0_i32_0 = arith.constant 0 : i32
    %c0_i32_1 = arith.constant 0 : i32
    return %c0_i32, %c0_i32_0 : i32, i32
  }
  func.func @transform_4(%arg0: i32) -> (i32, i32) {
    %c0_i32 = arith.constant 0 : i32
    %c0_i32_0 = arith.constant 0 : i32
    %c0_i32_1 = arith.constant 0 : i32
    return %c0_i32, %c0_i32_0 : i32, i32
  }
  func.func @transform_5(%arg0: i32) -> (i32, i32) {
    %c0_i32 = arith.constant 0 : i32
    %c0_i32_0 = arith.constant 0 : i32
    return %arg0, %c0_i32 : i32, i32
  }
}

</mosaic_0001>

<llo_original>
// kernel: mlp2_forward.1
$region0: #{mlp2_forward.1}
  #allocation0 [shape = 'u32[]', space=smem, size = 0x4, offset = 0x4, fixed_abs, tag = 'smem constant byte address 0x4 - core index']
  #allocation1 [shape = 'u32[144,128]{1,0:T(1,128)}', space=vmem, size = 0x12000, scoped, tag = 'internal scratch']
  %s0 = inlined_call_operand.vmem [shape: bf16[256,120], index: 0, kind: input, shape index: {}]
  %s1 = inlined_call_operand.vmem [shape: bf16[120,128], index: 1, kind: input, shape index: {}]
  %s2 = inlined_call_operand.vmem [shape: f32[1,128], index: 2, kind: input, shape index: {}]
  %s3 = inlined_call_operand.vmem [shape: bf16[128,60], index: 3, kind: input, shape index: {}]
  %s4 = inlined_call_operand.vmem [shape: f32[1,60], index: 4, kind: input, shape index: {}]
  %s5 = inlined_call_operand.vmem [shape: bf16[256,60], index: 5, kind: output, shape index: {}]
  %s6 = sld [smem:[#allocation0]]
  $region53: #{mlp2_forward.1} parent=0
    _
  %s8 = ssub.s32 1, %s6
  %s9 = scalar_select 0, %s8, %s6
  loop: start=0, step=1, limit=4
  $region2: #{mlp2_forward.1} parent=0 // loop_pre_header
    _
  $region3: #{mlp2_forward.1} parent=0 // loop_header
    %s11 = sphi 0, %s15
    %p12 = scmp.ge.s32.totalorder %s11, 4
    %s21 = sphi 0, %s23
    %s24 = sphi 0, %s21
    %s25 = sphi 0, %s24
    %s41 = sphi 0, %s25
    %s45 = sphi 0, %s45
    %s47 = sphi 0, %s45
    %s48 = sphi 0, %s47
    %s62 = sphi 0, %s48
    %s66 = sphi 0, %s66
    %s68 = sphi 0, %s66
    %s69 = sphi 0, %s68
    %s83 = sphi 0, %s69
    %s87 = sphi 0, %s87
    %s89 = sphi 0, %s87
    %s90 = sphi 0, %s89
    %s104 = sphi 0, %s90
    %s108 = sphi 0, %s108
    %s110 = sphi 0, %s108
    %s111 = sphi 0, %s110
    %s125 = sphi 0, %s111
    %s131 = sphi 0, %s133
    %s134 = sphi 0, %s131
    %s135 = sphi 0, %s134
    %s151 = sphi 0, %s135
  $region4: #{mlp2_forward.1} parent=0 // loop_header_branch
    %14 = sbr.rel (%p12) target = $region8
  $region5: #{mlp2_forward.1} parent=0 // loop_body
    %s16 = ssub.s32 %s11, 1
    %s17 = ssub.s32 %s11, 2
    %s18 = sadd.s32 %s11, 1
    %s19 = ssub.s32 %s11, %s18
    %p20 = scmp.eq.s32.totalorder %s19, 0
    %s22 = sadd.s32 %s21, 1
    %s23 = scalar_select %p20, %s21, %s22
    %p26 = pneg %p20
    %p27 = scmp.eq.s32.totalorder %s11, 1
    %p28 = por %p26, %p27
    %p29 = scmp.ne.s32.totalorder %s21, %s24
    %p30 = scmp.eq.s32.totalorder %s11, 0
    %p31 = por %p29, %p30
    %p32 = scmp.ne.s32.totalorder %s21, %s24
    %p33 = scmp.eq.s32.totalorder %s16, 1
    %p34 = por %p32, %p33
    %p35 = scmp.ne.s32.totalorder %s24, %s25
    %p36 = scmp.eq.s32.totalorder %s16, 0
    %p37 = por %p35, %p36
    %p38 = scmp.ne.s32.totalorder %s24, %s25
    %p39 = scmp.eq.s32.totalorder %s17, 1
    %p40 = por %p38, %p39
    %p42 = scmp.ne.s32.totalorder %s25, %s41
    %p43 = scmp.eq.s32.totalorder %s17, 0
    %p44 = por %p42, %p43
    %s46 = sadd.s32 %s45, 1
    %p49 = scmp.eq.s32.totalorder %s11, 1
    %p50 = scmp.ne.s32.totalorder %s45, %s47
    %p51 = scmp.eq.s32.totalorder %s11, 0
    %p52 = por %p50, %p51
    %p53 = scmp.ne.s32.totalorder %s45, %s47
    %p54 = scmp.eq.s32.totalorder %s16, 1
    %p55 = por %p53, %p54
    %p56 = scmp.ne.s32.totalorder %s47, %s48
    %p57 = scmp.eq.s32.totalorder %s16, 0
    %p58 = por %p56, %p57
    %p59 = scmp.ne.s32.totalorder %s47, %s48
    %p60 = scmp.eq.s32.totalorder %s17, 1
    %p61 = por %p59, %p60
    %p63 = scmp.ne.s32.totalorder %s48, %s62
    %p64 = scmp.eq.s32.totalorder %s17, 0
    %p65 = por %p63, %p64
    %s67 = sadd.s32 %s66, 1
    %p70 = scmp.eq.s32.totalorder %s11, 1
    %p71 = scmp.ne.s32.totalorder %s66, %s68
    %p72 = scmp.eq.s32.totalorder %s11, 0
    %p73 = por %p71, %p72
    %p74 = scmp.ne.s32.totalorder %s66, %s68
    %p75 = scmp.eq.s32.totalorder %s16, 1
    %p76 = por %p74, %p75
    %p77 = scmp.ne.s32.totalorder %s68, %s69
    %p78 = scmp.eq.s32.totalorder %s16, 0
    %p79 = por %p77, %p78
    %p80 = scmp.ne.s32.totalorder %s68, %s69
    %p81 = scmp.eq.s32.totalorder %s17, 1
    %p82 = por %p80, %p81
    %p84 = scmp.ne.s32.totalorder %s69, %s83
    %p85 = scmp.eq.s32.totalorder %s17, 0
    %p86 = por %p84, %p85
    %s88 = sadd.s32 %s87, 1
    %p91 = scmp.eq.s32.totalorder %s11, 1
    %p92 = scmp.ne.s32.totalorder %s87, %s89
    %p93 = scmp.eq.s32.totalorder %s11, 0
    %p94 = por %p92, %p93
    %p95 = scmp.ne.s32.totalorder %s87, %s89
    %p96 = scmp.eq.s32.totalorder %s16, 1
    %p97 = por %p95, %p96
    %p98 = scmp.ne.s32.totalorder %s89, %s90
    %p99 = scmp.eq.s32.totalorder %s16, 0
    %p100 = por %p98, %p99
    %p101 = scmp.ne.s32.totalorder %s89, %s90
    %p102 = scmp.eq.s32.totalorder %s17, 1
    %p103 = por %p101, %p102
    %p105 = scmp.ne.s32.totalorder %s90, %s104
    %p106 = scmp.eq.s32.totalorder %s17, 0
    %p107 = por %p105, %p106
    %s109 = sadd.s32 %s108, 1
    %p112 = scmp.eq.s32.totalorder %s11, 1
    %p113 = scmp.ne.s32.totalorder %s108, %s110
    %p114 = scmp.eq.s32.totalorder %s11, 0
    %p115 = por %p113, %p114
    %p116 = scmp.ne.s32.totalorder %s108, %s110
    %p117 = scmp.eq.s32.totalorder %s16, 1
    %p118 = por %p116, %p117
    %p119 = scmp.ne.s32.totalorder %s110, %s111
    %p120 = scmp.eq.s32.totalorder %s16, 0
    %p121 = por %p119, %p120
    %p122 = scmp.ne.s32.totalorder %s110, %s111
    %p123 = scmp.eq.s32.totalorder %s17, 1
    %p124 = por %p122, %p123
    %p126 = scmp.ne.s32.totalorder %s111, %s125
    %p127 = scmp.eq.s32.totalorder %s17, 0
    %p128 = por %p126, %p127
    %s129 = ssub.s32 %s11, %s18
    %p130 = scmp.eq.s32.totalorder %s129, 0
    %s132 = sadd.s32 %s131, 1
    %s133 = scalar_select %p130, %s131, %s132
    %p136 = pneg %p130
    %p137 = scmp.eq.s32.totalorder %s11, 1
    %p138 = por %p136, %p137
    %p139 = scmp.ne.s32.totalorder %s131, %s134
    %p140 = scmp.eq.s32.totalorder %s11, 0
    %p141 = por %p139, %p140
    %p142 = scmp.ne.s32.totalorder %s131, %s134
    %p143 = scmp.eq.s32.totalorder %s16, 1
    %p144 = por %p142, %p143
    %p145 = scmp.ne.s32.totalorder %s134, %s135
    %p146 = scmp.eq.s32.totalorder %s16, 0
    %p147 = por %p145, %p146
    %p148 = scmp.ne.s32.totalorder %s134, %s135
    %p149 = scmp.eq.s32.totalorder %s17, 1
    %p150 = por %p148, %p149
    %p152 = scmp.ne.s32.totalorder %s135, %s151
    %p153 = scmp.eq.s32.totalorder %s17, 0
    %p154 = por %p152, %p153
    %p155 = scmp.le.s32.totalorder 1, %s11
    %p156 = scmp.lt.s32.totalorder %s11, 3
    %p157 = pnand %p155, %p156
    %p158 = pneg %p157
    // Predicated region
    $region9: #{mlp2_forward.1} parent=5 // pred_check
      _
    $region10: #{mlp2_forward.1} parent=5 // pred_check_branch
      %160 = sbr.rel (%p157) target = $region12
    $region11: #{mlp2_forward.1} parent=5 // pred_region
      %s161 = ssub.s32 %s11, 1
      // Predicated region
      $region13: #{mlp2_forward.1} parent=11 // pred_check
        %p162 = pneg %p58
      $region14: #{mlp2_forward.1} parent=11 // pred_check_branch
        %164 = sbr.rel (%p162) target = $region16
      $region15: #{mlp2_forward.1} parent=11 // pred_region
        _
      $region16: #{mlp2_forward.1} parent=11 // pred_fallthru
        _
      // Predicated region
      $region17: #{mlp2_forward.1} parent=11 // pred_check
        %p165 = pneg %p79
      $region18: #{mlp2_forward.1} parent=11 // pred_check_branch
        %167 = sbr.rel (%p165) target = $region20
      $region19: #{mlp2_forward.1} parent=11 // pred_region
        _
      $region20: #{mlp2_forward.1} parent=11 // pred_fallthru
        _
      // Predicated region
      $region21: #{mlp2_forward.1} parent=11 // pred_check
        %p168 = pneg %p100
      $region22: #{mlp2_forward.1} parent=11 // pred_check_branch
        %170 = sbr.rel (%p168) target = $region24
      $region23: #{mlp2_forward.1} parent=11 // pred_region
        _
      $region24: #{mlp2_forward.1} parent=11 // pred_fallthru
        _
      // Predicated region
      $region25: #{mlp2_forward.1} parent=11 // pred_check
        %p171 = pneg %p121
      $region26: #{mlp2_forward.1} parent=11 // pred_check_branch
        %173 = sbr.rel (%p171) target = $region28
      $region27: #{mlp2_forward.1} parent=11 // pred_region
        _
      $region28: #{mlp2_forward.1} parent=11 // pred_fallthru
        _
    $region12: #{mlp2_forward.1} parent=5 // pred_fallthru
      _
    %p174 = scmp.lt.s32.totalorder %s11, 2
    // Predicated region
    $region29: #{mlp2_forward.1} parent=5 // pred_check
      %p175 = pneg %p174
    $region30: #{mlp2_forward.1} parent=5 // pred_check_branch
      %177 = sbr.rel (%p175) target = $region32
    $region31: #{mlp2_forward.1} parent=5 // pred_region
      // Predicated region
      $region33: #{mlp2_forward.1} parent=31 // pred_check
        %p178 = pneg %p31
      $region34: #{mlp2_forward.1} parent=31 // pred_check_branch
        %180 = sbr.rel (%p178) target = $region36
      $region35: #{mlp2_forward.1} parent=31 // pred_region
        %s181 = smul.u32 16, %s11
        %p182 = scmp.lt.s32.totalorder %s181, 31
        %s183 = scalar_select %p182, %s181, 31
        %s184 = smul.addr %s183, 4
        %s185 = scalar_lea.vmem %s0, %s184
        %s186 = smul.u32 16, %s11
      $region36: #{mlp2_forward.1} parent=31 // pred_fallthru
        _
    $region32: #{mlp2_forward.1} parent=5 // pred_fallthru
      _
    %p187 = scmp.le.s32.totalorder 1, %s11
    %p188 = scmp.lt.s32.totalorder %s11, 3
    %p189 = pnand %p187, %p188
    %p190 = pneg %p189
    // Predicated region
    $region37: #{mlp2_forward.1} parent=5 // pred_check
      _
    $region38: #{mlp2_forward.1} parent=5 // pred_check_branch
      %192 = sbr.rel (%p189) target = $region40
    $region39: #{mlp2_forward.1} parent=5 // pred_region
      %s193 = ssub.s32 %s11, 1
      %s194 = smul.u32 16, %s16
      %p195 = scmp.lt.s32.totalorder %s194, 31
      %s196 = scalar_select %p195, %s194, 31
      %s197 = smul.addr %s196, 4
      %s198 = scalar_lea.vmem %s0, %s197
      %p199 = pneg %p37
      %p200 = pneg %p34
      %p201 = pneg %p58
      %p202 = pneg %p55
      %p203 = pneg %p79
      %p204 = pneg %p76
      %p205 = pneg %p100
      %p206 = pneg %p97
      %p207 = pneg %p121
      %p208 = pneg %p118
      %p209 = pneg %p147
      %p210 = pneg %p144
      %s211 = smul.u32 16, %s16
      %p212 = scmp.lt.s32.totalorder %s211, 31
      %s213 = scalar_select %p212, %s211, 31
      %s214 = smul.addr %s213, 4
      %s215 = scalar_lea.vmem %s5, %s214
      %s216 = smul.u32 16, %s16
      %p217 = scmp.lt.s32.totalorder %s216, 31
      %s218 = scalar_select %p217, %s216, 31
      %s219 = smul.addr %s218, 4
      %s220 = scalar_lea.vmem %s0, %s219
      %s221 = smul.u32 16, %s16
      %s222 = smul.u32 16, %s16
      %p223 = scmp.lt.s32.totalorder %s222, 31
      %s224 = scalar_select %p223, %s222, 31
      %s225 = smul.addr %s224, 4
      %s226 = scalar_lea.vmem %s5, %s225
      %s227 = smul.u32 16, %s16
      %v229 = vld [vmem:[%s220] sm:$0xf]
      %v230 = vld [vmem:[%s220 + $0x4] sm:$0xf]
      %v231 = vld [vmem:[%s220 + $0x8] sm:$0xf]
      %v232 = vld [vmem:[%s220 + $0xc] sm:$0xf]
      %v233 = vld [vmem:[%s220 + $0x10] sm:$0xf]
      %v234 = vld [vmem:[%s220 + $0x14] sm:$0xf]
      %v235 = vld [vmem:[%s220 + $0x18] sm:$0xf]
      %v236 = vld [vmem:[%s220 + $0x1c] sm:$0xf]
      %v237 = vld [vmem:[%s220 + $0x20] sm:$0xf]
      %v238 = vld [vmem:[%s220 + $0x24] sm:$0xf]
      %v239 = vld [vmem:[%s220 + $0x28] sm:$0xf]
      %v240 = vld [vmem:[%s220 + $0x2c] sm:$0xf]
      %v241 = vld [vmem:[%s220 + $0x30] sm:$0xf]
      %v242 = vld [vmem:[%s220 + $0x34] sm:$0xf]
      %v243 = vld [vmem:[%s220 + $0x38] sm:$0xf]
      %v244 = vld [vmem:[%s220 + $0x3c] sm:$0xf]
      %v245 = vld [vmem:[%s1] sm:$0xf]
      %v246 = vld [vmem:[%s1 + $0x4] sm:$0xf]
      %v247 = vld [vmem:[%s1 + $0x8] sm:$0xf]
      %v248 = vld [vmem:[%s1 + $0xc] sm:$0xf]
      %v249 = vld [vmem:[%s1 + $0x10] sm:$0xf]
      %v250 = vld [vmem:[%s1 + $0x14] sm:$0xf]
      %v251 = vld [vmem:[%s1 + $0x18] sm:$0xf]
      %v252 = vld [vmem:[%s1 + $0x1c] sm:$0xf]
      %v253 = vld [vmem:[%s1 + $0x20] sm:$0xf]
      %v254 = vld [vmem:[%s1 + $0x24] sm:$0xf]
      %v255 = vld [vmem:[%s1 + $0x28] sm:$0xf]
      %v256 = vld [vmem:[%s1 + $0x2c] sm:$0xf]
      %v257 = vld [vmem:[%s1 + $0x30] sm:$0xf]
      %v258 = vld [vmem:[%s1 + $0x34] sm:$0xf]
      %v259 = vld [vmem:[%s1 + $0x38] sm:$0xf]
      %v260 = vld [vmem:[%s2] sm:$0x1]
      %v262 = vlaneseq
      %v263 = vshrl.u32 %v262, 7
      %v264 = vsub.s32 0, %v263
      %v265 = vrot.slane %v260, %v264
      %v283 = vunpack.c.l.b16 %v229
      %v284 = vunpack.c.l.b16 %v230
      %v285 = vunpack.c.l.b16 %v231
      %v286 = vunpack.c.l.b16 %v232
      %v287 = vunpack.c.l.b16 %v233
      %v288 = vunpack.c.l.b16 %v234
      %v289 = vunpack.c.l.b16 %v235
      %v290 = vunpack.c.l.b16 %v236
      %v291 = vunpack.c.l.b16 %v237
      %v292 = vunpack.c.l.b16 %v238
      %v293 = vunpack.c.l.b16 %v239
      %v294 = vunpack.c.l.b16 %v240
      %v295 = vunpack.c.l.b16 %v241
      %v296 = vunpack.c.l.b16 %v242
      %v297 = vunpack.c.l.b16 %v243
      %v298 = vunpack.c.l.b16 %v244
      %v299 = vpack.c.b16 %v284, %v283
      %v300 = vpack.c.b16 %v286, %v285
      %v301 = vpack.c.b16 %v288, %v287
      %v302 = vpack.c.b16 %v290, %v289
      %v303 = vpack.c.b16 %v292, %v291
      %v304 = vpack.c.b16 %v294, %v293
      %v305 = vpack.c.b16 %v296, %v295
      %v306 = vpack.c.b16 %v298, %v297
      %v322 = vunpack.c.l.b16 %v245
      %v323 = vunpack.c.l.b16 %v246
      %v324 = vunpack.c.l.b16 %v247
      %v325 = vunpack.c.l.b16 %v248
      %v326 = vunpack.c.l.b16 %v249
      %v327 = vunpack.c.l.b16 %v250
      %v328 = vunpack.c.l.b16 %v251
      %v329 = vunpack.c.l.b16 %v252
      %v330 = vunpack.c.l.b16 %v253
      %v331 = vunpack.c.l.b16 %v254
      %v332 = vunpack.c.l.b16 %v255
      %v333 = vunpack.c.l.b16 %v256
      %v334 = vunpack.c.l.b16 %v257
      %v335 = vunpack.c.l.b16 %v258
      %v336 = vunpack.c.l.b16 %v259
      %v337 = vpack.c.b16 %v323, %v322
      %v338 = vpack.c.b16 %v325, %v324
      %v339 = vpack.c.b16 %v327, %v326
      %v340 = vpack.c.b16 %v329, %v328
      %v341 = vpack.c.b16 %v331, %v330
      %v342 = vpack.c.b16 %v333, %v332
      %v343 = vpack.c.b16 %v335, %v334
      %v344 = vpack.c.b16 %v336, %v336
      %vm352 = vcmask 982016
      %v354 = vsel %vm352, %v299, 0
      %v357 = vsel %vm352, %v300, 0
      %v360 = vsel %vm352, %v301, 0
      %v363 = vsel %vm352, %v302, 0
      %v366 = vsel %vm352, %v303, 0
      %v369 = vsel %vm352, %v304, 0
      %v372 = vsel %vm352, %v305, 0
      %v375 = vsel %vm352, %v306, 0
      %vm377 = vcmask 1043456
      %v379 = vsel %vm377, %v344, 0
      %381 = vmatprep.subr.bf16.mxu0 0
      %382 = vmatpush1.bf16.msra.mxu0 %v337
      %383 = vmatprep.subr.bf16.mxu0 0
      %384 = vmatpush1.bf16.msra.mxu0 %v338
      %385 = vmatprep.subr.bf16.mxu0 0
      %386 = vmatpush1.bf16.msra.mxu0 %v339
      %387 = vmatprep.subr.bf16.mxu0 0
      %388 = vmatpush1.bf16.msra.mxu0 %v340
      %389 = vmatprep.subr.bf16.mxu0 0
      %390 = vmatpush1.bf16.msra.mxu0 %v341
      %391 = vmatprep.subr.bf16.mxu0 0
      %392 = vmatpush1.bf16.msra.mxu0 %v342
      %393 = vmatprep.subr.bf16.mxu0 0
      %394 = vmatpush1.bf16.msra.mxu0 %v343
      %395 = vmatprep.subr.bf16.mxu0 0
      %396 = vmatpush1.bf16.msra.mxu0 %v379
      %397 = vmatprep.subr.bf16.mxu0 0
      %398 = vmatpush1.bf16.msra.mxu0 0
      %399 = vmatprep.subr.bf16.mxu0 0
      %400 = vmatpush1.bf16.msra.mxu0 0
      %401 = vmatprep.subr.bf16.mxu0 0
      %402 = vmatpush1.bf16.msra.mxu0 0
      %403 = vmatprep.subr.bf16.mxu0 0
      %404 = vmatpush1.bf16.msra.mxu0 0
      %405 = vmatprep.subr.bf16.mxu0 0
      %406 = vmatpush1.bf16.msra.mxu0 0
      %407 = vmatprep.subr.bf16.mxu0 0
      %408 = vmatpush1.bf16.msra.mxu0 0
      %409 = vmatprep.subr.bf16.mxu0 0
      %410 = vmatpush1.bf16.msra.mxu0 0
      %411 = vmatprep.subr.bf16.mxu0 0
      %412 = vmatpush1.bf16.msra.mxu0 0
      %413 = vmatprep.mubr.bf16.mxu0 0
      %414 = vmatmul.mubr.bf16.gmra.mrb[0].mxu0 %v354
      %v415 = vpop.f32.mrb[0].mxu0
      %v416 = vadd.f32 %v265, %v415
      %v417 = vpop.f32.mrb[0].mxu0
      %v418 = vpop.f32.mrb[0].mxu0
      %v419 = vadd.f32 %v265, %v418
      %v420 = vpop.f32.mrb[0].mxu0
      %421 = vmatprep.mubr.bf16.mxu0 0
      %422 = vmatmul.mubr.bf16.gmra.mrb[0].mxu0 %v357
      %v423 = vpop.f32.mrb[0].mxu0
      %v424 = vadd.f32 %v265, %v423
      %v425 = vpop.f32.mrb[0].mxu0
      %v426 = vpop.f32.mrb[0].mxu0
      %v427 = vadd.f32 %v265, %v426
      %v428 = vpop.f32.mrb[0].mxu0
      %429 = vmatprep.mubr.bf16.mxu0 0
      %430 = vmatmul.mubr.bf16.gmra.mrb[0].mxu0 %v360
      %v431 = vpop.f32.mrb[0].mxu0
      %v432 = vadd.f32 %v265, %v431
      %v433 = vpop.f32.mrb[0].mxu0
      %v434 = vpop.f32.mrb[0].mxu0
      %v435 = vadd.f32 %v265, %v434
      %v436 = vpop.f32.mrb[0].mxu0
      %437 = vmatprep.mubr.bf16.mxu0 0
      %438 = vmatmul.mubr.bf16.gmra.mrb[0].mxu0 %v363
      %v439 = vpop.f32.mrb[0].mxu0
      %v440 = vadd.f32 %v265, %v439
      %v441 = vpop.f32.mrb[0].mxu0
      %v442 = vpop.f32.mrb[0].mxu0
      %v443 = vadd.f32 %v265, %v442
      %v444 = vpop.f32.mrb[0].mxu0
      %445 = vmatprep.mubr.bf16.mxu0 0
      %446 = vmatmul.mubr.bf16.gmra.mrb[0].mxu0 %v366
      %v447 = vpop.f32.mrb[0].mxu0
      %v448 = vadd.f32 %v265, %v447
      %v449 = vpop.f32.mrb[0].mxu0
      %v450 = vpop.f32.mrb[0].mxu0
      %v451 = vadd.f32 %v265, %v450
      %v452 = vpop.f32.mrb[0].mxu0
      %453 = vmatprep.mubr.bf16.mxu0 0
      %454 = vmatmul.mubr.bf16.gmra.mrb[0].mxu0 %v369
      %v455 = vpop.f32.mrb[0].mxu0
      %v456 = vadd.f32 %v265, %v455
      %v457 = vpop.f32.mrb[0].mxu0
      %v458 = vpop.f32.mrb[0].mxu0
      %v459 = vadd.f32 %v265, %v458
      %v460 = vpop.f32.mrb[0].mxu0
      %461 = vmatprep.mubr.bf16.mxu0 0
      %462 = vmatmul.mubr.bf16.gmra.mrb[0].mxu0 %v372
      %v463 = vpop.f32.mrb[0].mxu0
      %v464 = vadd.f32 %v265, %v463
      %v465 = vpop.f32.mrb[0].mxu0
      %v466 = vpop.f32.mrb[0].mxu0
      %v467 = vadd.f32 %v265, %v466
      %v468 = vpop.f32.mrb[0].mxu0
      %469 = vmatprep.mubr.bf16.mxu0 0
      %470 = vmatmul.mubr.bf16.gmra.mrb[0].mxu0 %v375
      %v471 = vpop.f32.mrb[0].mxu0
      %v472 = vadd.f32 %v265, %v471
      %v473 = vpop.f32.mrb[0].mxu0
      %v474 = vpop.f32.mrb[0].mxu0
      %v475 = vadd.f32 %v265, %v474
      %v476 = vpop.f32.mrb[0].mxu0
      %477 = vdwg.mxu0
      %v478 = vmax.f32 %v416, 0.0
      %v479 = vmax.f32 %v419, 0.0
      %v480 = vmax.f32 %v424, 0.0
      %v481 = vmax.f32 %v427, 0.0
      %v482 = vmax.f32 %v432, 0.0
      %v483 = vmax.f32 %v435, 0.0
      %v484 = vmax.f32 %v440, 0.0
      %v485 = vmax.f32 %v443, 0.0
      %v486 = vmax.f32 %v448, 0.0
      %v487 = vmax.f32 %v451, 0.0
      %v488 = vmax.f32 %v456, 0.0
      %v489 = vmax.f32 %v459, 0.0
      %v490 = vmax.f32 %v464, 0.0
      %v491 = vmax.f32 %v467, 0.0
      %v492 = vmax.f32 %v472, 0.0
      %v493 = vmax.f32 %v475, 0.0
      %v494 = vpack.c.bf16 %v479, %v478
      %v495 = vpack.c.bf16 %v481, %v480
      %v496 = vpack.c.bf16 %v483, %v482
      %v497 = vpack.c.bf16 %v485, %v484
      %v498 = vpack.c.bf16 %v487, %v486
      %v499 = vpack.c.bf16 %v489, %v488
      %v500 = vpack.c.bf16 %v491, %v490
      %v501 = vpack.c.bf16 %v493, %v492
      %v502 = vld [vmem:[%s3] sm:$0xf]
      %v503 = vld [vmem:[%s3 + $0x4] sm:$0xf]
      %v504 = vld [vmem:[%s3 + $0x8] sm:$0xf]
      %v505 = vld [vmem:[%s3 + $0xc] sm:$0xf]
      %v506 = vld [vmem:[%s3 + $0x10] sm:$0xf]
      %v507 = vld [vmem:[%s3 + $0x14] sm:$0xf]
      %v508 = vld [vmem:[%s3 + $0x18] sm:$0xf]
      %v509 = vld [vmem:[%s3 + $0x1c] sm:$0xf]
      %v510 = vld [vmem:[%s3 + $0x20] sm:$0xf]
      %v511 = vld [vmem:[%s3 + $0x24] sm:$0xf]
      %v512 = vld [vmem:[%s3 + $0x28] sm:$0xf]
      %v513 = vld [vmem:[%s3 + $0x2c] sm:$0xf]
      %v514 = vld [vmem:[%s3 + $0x30] sm:$0xf]
      %v515 = vld [vmem:[%s3 + $0x34] sm:$0xf]
      %v516 = vld [vmem:[%s3 + $0x38] sm:$0xf]
      %v517 = vld [vmem:[%s3 + $0x3c] sm:$0xf]
      %v518 = vld [vmem:[%s4] sm:$0x1]
      %v520 = vlaneseq
      %v521 = vshrl.u32 %v520, 7
      %v522 = vsub.s32 0, %v521
      %v523 = vrot.slane %v518, %v522
      %v541 = vunpack.c.l.b16 %v502
      %v542 = vunpack.c.l.b16 %v503
      %v543 = vunpack.c.l.b16 %v504
      %v544 = vunpack.c.l.b16 %v505
      %v545 = vunpack.c.l.b16 %v506
      %v546 = vunpack.c.l.b16 %v507
      %v547 = vunpack.c.l.b16 %v508
      %v548 = vunpack.c.l.b16 %v509
      %v549 = vunpack.c.l.b16 %v510
      %v550 = vunpack.c.l.b16 %v511
      %v551 = vunpack.c.l.b16 %v512
      %v552 = vunpack.c.l.b16 %v513
      %v553 = vunpack.c.l.b16 %v514
      %v554 = vunpack.c.l.b16 %v515
      %v555 = vunpack.c.l.b16 %v516
      %v556 = vunpack.c.l.b16 %v517
      %v557 = vpack.c.b16 %v542, %v541
      %v558 = vpack.c.b16 %v544, %v543
      %v559 = vpack.c.b16 %v546, %v545
      %v560 = vpack.c.b16 %v548, %v547
      %v561 = vpack.c.b16 %v550, %v549
      %v562 = vpack.c.b16 %v552, %v551
      %v563 = vpack.c.b16 %v554, %v553
      %v564 = vpack.c.b16 %v556, %v555
      %573 = vmatprep.subr.bf16.mxu0 0
      %574 = vmatpush1.bf16.msra.mxu0 %v557
      %575 = vmatprep.subr.bf16.mxu0 0
      %576 = vmatpush1.bf16.msra.mxu0 %v558
      %577 = vmatprep.subr.bf16.mxu0 0
      %578 = vmatpush1.bf16.msra.mxu0 %v559
      %579 = vmatprep.subr.bf16.mxu0 0
      %580 = vmatpush1.bf16.msra.mxu0 %v560
      %581 = vmatprep.subr.bf16.mxu0 0
      %582 = vmatpush1.bf16.msra.mxu0 %v561
      %583 = vmatprep.subr.bf16.mxu0 0
      %584 = vmatpush1.bf16.msra.mxu0 %v562
      %585 = vmatprep.subr.bf16.mxu0 0
      %586 = vmatpush1.bf16.msra.mxu0 %v563
      %587 = vmatprep.subr.bf16.mxu0 0
      %588 = vmatpush1.bf16.msra.mxu0 %v564
      %589 = vmatprep.subr.bf16.mxu0 0
      %590 = vmatpush1.bf16.msra.mxu0 0
      %591 = vmatprep.subr.bf16.mxu0 0
      %592 = vmatpush1.bf16.msra.mxu0 0
      %593 = vmatprep.subr.bf16.mxu0 0
      %594 = vmatpush1.bf16.msra.mxu0 0
      %595 = vmatprep.subr.bf16.mxu0 0
      %596 = vmatpush1.bf16.msra.mxu0 0
      %597 = vmatprep.subr.bf16.mxu0 0
      %598 = vmatpush1.bf16.msra.mxu0 0
      %599 = vmatprep.subr.bf16.mxu0 0
      %600 = vmatpush1.bf16.msra.mxu0 0
      %601 = vmatprep.subr.bf16.mxu0 0
      %602 = vmatpush1.bf16.msra.mxu0 0
      %603 = vmatprep.subr.bf16.mxu0 0
      %604 = vmatpush1.bf16.msra.mxu0 0
      %605 = vmatprep.mubr.bf16.mxu0 0
      %606 = vmatmul.mubr.bf16.gmra.mrb[0].mxu0 %v494
      %v607 = vpop.f32.mrb[0].mxu0
      %v608 = vadd.f32 %v523, %v607
      %v609 = vpop.f32.mrb[0].mxu0
      %v610 = vpop.f32.mrb[0].mxu0
      %v611 = vadd.f32 %v523, %v610
      %v612 = vpop.f32.mrb[0].mxu0
      %613 = vmatprep.mubr.bf16.mxu0 0
      %614 = vmatmul.mubr.bf16.gmra.mrb[0].mxu0 %v495
      %v615 = vpop.f32.mrb[0].mxu0
      %v616 = vadd.f32 %v523, %v615
      %v617 = vpop.f32.mrb[0].mxu0
      %v618 = vpop.f32.mrb[0].mxu0
      %v619 = vadd.f32 %v523, %v618
      %v620 = vpop.f32.mrb[0].mxu0
      %621 = vmatprep.mubr.bf16.mxu0 0
      %622 = vmatmul.mubr.bf16.gmra.mrb[0].mxu0 %v496
      %v623 = vpop.f32.mrb[0].mxu0
      %v624 = vadd.f32 %v523, %v623
      %v625 = vpop.f32.mrb[0].mxu0
      %v626 = vpop.f32.mrb[0].mxu0
      %v627 = vadd.f32 %v523, %v626
      %v628 = vpop.f32.mrb[0].mxu0
      %629 = vmatprep.mubr.bf16.mxu0 0
      %630 = vmatmul.mubr.bf16.gmra.mrb[0].mxu0 %v497
      %v631 = vpop.f32.mrb[0].mxu0
      %v632 = vadd.f32 %v523, %v631
      %v633 = vpop.f32.mrb[0].mxu0
      %v634 = vpop.f32.mrb[0].mxu0
      %v635 = vadd.f32 %v523, %v634
      %v636 = vpop.f32.mrb[0].mxu0
      %637 = vmatprep.mubr.bf16.mxu0 0
      %638 = vmatmul.mubr.bf16.gmra.mrb[0].mxu0 %v498
      %v639 = vpop.f32.mrb[0].mxu0
      %v640 = vadd.f32 %v523, %v639
      %v641 = vpop.f32.mrb[0].mxu0
      %v642 = vpop.f32.mrb[0].mxu0
      %v643 = vadd.f32 %v523, %v642
      %v644 = vpop.f32.mrb[0].mxu0
      %645 = vmatprep.mubr.bf16.mxu0 0
      %646 = vmatmul.mubr.bf16.gmra.mrb[0].mxu0 %v499
      %v647 = vpop.f32.mrb[0].mxu0
      %v648 = vadd.f32 %v523, %v647
      %v649 = vpop.f32.mrb[0].mxu0
      %v650 = vpop.f32.mrb[0].mxu0
      %v651 = vadd.f32 %v523, %v650
      %v652 = vpop.f32.mrb[0].mxu0
      %653 = vmatprep.mubr.bf16.mxu0 0
      %654 = vmatmul.mubr.bf16.gmra.mrb[0].mxu0 %v500
      %v655 = vpop.f32.mrb[0].mxu0
      %v656 = vadd.f32 %v523, %v655
      %v657 = vpop.f32.mrb[0].mxu0
      %v658 = vpop.f32.mrb[0].mxu0
      %v659 = vadd.f32 %v523, %v658
      %v660 = vpop.f32.mrb[0].mxu0
      %661 = vmatprep.mubr.bf16.mxu0 0
      %662 = vmatmul.mubr.bf16.gmra.mrb[0].mxu0 %v501
      %v663 = vpop.f32.mrb[0].mxu0
      %v664 = vadd.f32 %v523, %v663
      %v665 = vpop.f32.mrb[0].mxu0
      %v666 = vpop.f32.mrb[0].mxu0
      %v667 = vadd.f32 %v523, %v666
      %v668 = vpop.f32.mrb[0].mxu0
      %669 = vdwg.mxu0
      %v670 = vpack.c.bf16 %v611, %v608
      %v671 = vpack.c.bf16 %v619, %v616
      %v672 = vpack.c.bf16 %v627, %v624
      %v673 = vpack.c.bf16 %v635, %v632
      %v674 = vpack.c.bf16 %v643, %v640
      %v675 = vpack.c.bf16 %v651, %v648
      %v676 = vpack.c.bf16 %v659, %v656
      %v677 = vpack.c.bf16 %v667, %v664
      %v686 = vunpack.c.l.b16 %v670
      %v687 = vunpack.c.h.b16 %v670
      %v688 = vunpack.c.l.b16 %v671
      %v689 = vunpack.c.h.b16 %v671
      %v690 = vunpack.c.l.b16 %v672
      %v691 = vunpack.c.h.b16 %v672
      %v692 = vunpack.c.l.b16 %v673
      %v693 = vunpack.c.h.b16 %v673
      %v694 = vunpack.c.l.b16 %v674
      %v695 = vunpack.c.h.b16 %v674
      %v696 = vunpack.c.l.b16 %v675
      %v697 = vunpack.c.h.b16 %v675
      %v698 = vunpack.c.l.b16 %v676
      %v699 = vunpack.c.h.b16 %v676
      %v700 = vunpack.c.l.b16 %v677
      %v701 = vunpack.c.h.b16 %v677
      %v702 = vpack.c.b16 %v686, %v686
      %v703 = vpack.c.b16 %v687, %v687
      %v704 = vpack.c.b16 %v688, %v688
      %v705 = vpack.c.b16 %v689, %v689
      %v706 = vpack.c.b16 %v690, %v690
      %v707 = vpack.c.b16 %v691, %v691
      %v708 = vpack.c.b16 %v692, %v692
      %v709 = vpack.c.b16 %v693, %v693
      %v710 = vpack.c.b16 %v694, %v694
      %v711 = vpack.c.b16 %v695, %v695
      %v712 = vpack.c.b16 %v696, %v696
      %v713 = vpack.c.b16 %v697, %v697
      %v714 = vpack.c.b16 %v698, %v698
      %v715 = vpack.c.b16 %v699, %v699
      %v716 = vpack.c.b16 %v700, %v700
      %v717 = vpack.c.b16 %v701, %v701
      %vm734 = vcmask 486400
      %735 = vst.msk [vmem:[%s226] sm:$0xf] %vm734, %v702
      %736 = vst.msk [vmem:[%s226 + $0x4] sm:$0xf] %vm734, %v703
      %737 = vst.msk [vmem:[%s226 + $0x8] sm:$0xf] %vm734, %v704
      %738 = vst.msk [vmem:[%s226 + $0xc] sm:$0xf] %vm734, %v705
      %739 = vst.msk [vmem:[%s226 + $0x10] sm:$0xf] %vm734, %v706
      %740 = vst.msk [vmem:[%s226 + $0x14] sm:$0xf] %vm734, %v707
      %741 = vst.msk [vmem:[%s226 + $0x18] sm:$0xf] %vm734, %v708
      %742 = vst.msk [vmem:[%s226 + $0x1c] sm:$0xf] %vm734, %v709
      %743 = vst.msk [vmem:[%s226 + $0x20] sm:$0xf] %vm734, %v710
      %744 = vst.msk [vmem:[%s226 + $0x24] sm:$0xf] %vm734, %v711
      %745 = vst.msk [vmem:[%s226 + $0x28] sm:$0xf] %vm734, %v712
      %746 = vst.msk [vmem:[%s226 + $0x2c] sm:$0xf] %vm734, %v713
      %747 = vst.msk [vmem:[%s226 + $0x30] sm:$0xf] %vm734, %v714
      %748 = vst.msk [vmem:[%s226 + $0x34] sm:$0xf] %vm734, %v715
      %749 = vst.msk [vmem:[%s226 + $0x38] sm:$0xf] %vm734, %v716
      %750 = vst.msk [vmem:[%s226 + $0x3c] sm:$0xf] %vm734, %v717
      %s751 = smul.u32 16, %s16
      %p752 = scmp.lt.s32.totalorder %s751, 31
      %s753 = scalar_select %p752, %s751, 31
      %s754 = smul.addr %s753, 4
      %s755 = scalar_lea.vmem %s5, %s754
      // Predicated region
      $region41: #{mlp2_forward.1} parent=39 // pred_check
        %p756 = pneg %p144
      $region42: #{mlp2_forward.1} parent=39 // pred_check_branch
        %758 = sbr.rel (%p756) target = $region44
      $region43: #{mlp2_forward.1} parent=39 // pred_region
        %s759 = smul.u32 16, %s16
      $region44: #{mlp2_forward.1} parent=39 // pred_fallthru
        _
    $region40: #{mlp2_forward.1} parent=5 // pred_fallthru
      _
    %p760 = scmp.le.s32.totalorder 2, %s11
    // Predicated region
    $region45: #{mlp2_forward.1} parent=5 // pred_check
      %p761 = pneg %p760
    $region46: #{mlp2_forward.1} parent=5 // pred_check_branch
      %763 = sbr.rel (%p761) target = $region48
    $region47: #{mlp2_forward.1} parent=5 // pred_region
      %s764 = ssub.s32 %s11, 2
      // Predicated region
      $region49: #{mlp2_forward.1} parent=47 // pred_check
        %p765 = pneg %p150
      $region50: #{mlp2_forward.1} parent=47 // pred_check_branch
        %767 = sbr.rel (%p765) target = $region52
      $region51: #{mlp2_forward.1} parent=47 // pred_region
        %s768 = smul.u32 16, %s17
        %p769 = scmp.lt.s32.totalorder %s768, 31
        %s770 = scalar_select %p769, %s768, 31
        %s771 = smul.addr %s770, 4
        %s772 = scalar_lea.vmem %s5, %s771
      $region52: #{mlp2_forward.1} parent=47 // pred_fallthru
        _
    $region48: #{mlp2_forward.1} parent=5 // pred_fallthru
      _
  $region6: #{mlp2_forward.1} parent=0 // loop_footer
    %s15 = sadd.s32 1, %s11
  $region7: #{mlp2_forward.1} parent=0 // loop_footer_branch
    %10 = sbr.rel target = $region3
  $region8: #{mlp2_forward.1} parent=0 // loop_exit
    _

</llo_original>
